<compile_context>
chip_gen: v5e
topology: v5e:2x2
jax: 0.10.0
libtpu: 0.0.40
codegen_flags: <defaults>
</compile_context>

<pallas_src>
import jax
import jax.numpy as jnp
from jax.experimental import pallas as pl
from jax.experimental.pallas import tpu as pltpu

# ---- synthetic hyper-parameters (shapes implied by the module __init__) ----
DECL_INPUT_SIZE = 32
DECL_L1_NODE = 64
DECL_L2_NODE = 64
DECL_L3_NODE = 32
DECL_OUT = 2

PAD = 128      # lane-dim padding applied to every layer width
BATCH = 16

LAYER_DIMS = (
    (DECL_INPUT_SIZE, DECL_L1_NODE),
    (DECL_L1_NODE, DECL_L2_NODE),
    (DECL_L2_NODE, DECL_L3_NODE),
    (DECL_L3_NODE, DECL_OUT),
)


def _leaky_relu(v):
    # torch.nn.functional.leaky_relu default negative_slope = 0.01
    return jnp.where(v > 0, v, 0.01 * v)


def decl_kernel(x_ref, w_ref, b_ref, o_ref):
    # Whole (padded) batch in one invocation: four fused 128-wide MXU matmuls.
    # TODO(synk): dropout is identity in inference mode; training-mode dropout
    # (random masking) is intentionally not reproduced here.
    h = x_ref[...]                                                     # (Bp, 128)
    h = _leaky_relu(
        jnp.dot(h, w_ref[0], preferred_element_type=jnp.float32) + b_ref[0])
    h = _leaky_relu(
        jnp.dot(h, w_ref[1], preferred_element_type=jnp.float32) + b_ref[1])
    h = _leaky_relu(
        jnp.dot(h, w_ref[2], preferred_element_type=jnp.float32) + b_ref[2])
    o_ref[...] = (
        jnp.dot(h, w_ref[3], preferred_element_type=jnp.float32) + b_ref[3])


def _pack_params(params):
    """Stack the 4 layers into one padded weight tensor + one bias tensor.

    Weights are stored (in, out); zero-padded to (128, 128) each and stacked
    to (4, 128, 128).  Biases zero-padded to (1, 128) and stacked (4, 1, 128).
    Zero padding keeps the extra lanes exactly zero through every layer.
    """
    w_stack = jnp.zeros((4, PAD, PAD), jnp.float32)
    b_stack = jnp.zeros((4, 1, PAD), jnp.float32)
    for l, (fi, fo) in enumerate(LAYER_DIMS):
        w_stack = w_stack.at[l, :fi, :fo].set(params[f"w{l + 1}"])
        b_stack = b_stack.at[l, 0, :fo].set(params[f"b{l + 1}"][0])
    return w_stack, b_stack


def brumaire_decl_forward(x, params):
    """x: (B, DECL_INPUT_SIZE) f32. params: dict of (in,out) weights / (1,out) biases."""
    B, D = x.shape
    assert D == DECL_INPUT_SIZE

    # Pad batch to a sublane multiple and features to a full 128-lane slab.
    Bp = ((B + 7) // 8) * 8
    x_pad = jnp.zeros((Bp, PAD), jnp.float32).at[:B, :D].set(x)

    w_stack, b_stack = _pack_params(params)

    out_pad = pl.pallas_call(
        decl_kernel,
        out_shape=jax.ShapeDtypeStruct((Bp, PAD), jnp.float32),
        grid_spec=pltpu.PrefetchScalarGridSpec(
            num_scalar_prefetch=0,
            grid=(1,),  # single step: whole problem fits trivially in VMEM
            in_specs=[
                pl.BlockSpec((Bp, PAD), lambda i: (0, 0)),
                pl.BlockSpec((4, PAD, PAD), lambda i: (0, 0, 0)),
                pl.BlockSpec((4, 1, PAD), lambda i: (0, 0, 0)),
            ],
            out_specs=pl.BlockSpec((Bp, PAD), lambda i: (0, 0)),
        ),
        compiler_params=pltpu.CompilerParams(
            dimension_semantics=("arbitrary",)),
    )(x_pad, w_stack, b_stack)

    # Strip padding: real outputs live in the first DECL_OUT lanes.
    return out_pad[:B, :DECL_OUT]


def init_params(key):
    """Deterministic param init mimicking torch.nn.Linear shapes.

    torch stores weight as (out, in); we store the transpose (in, out) so the
    kernel does x @ W directly. Bias kept as (1, out).
    """
    ks = jax.random.split(key, 8)

    def linear(kw, kb, fan_in, fan_out):
        bound = 1.0 / jnp.sqrt(fan_in)
        w = jax.random.uniform(kw, (fan_in, fan_out), jnp.float32, -bound, bound)
        b = jax.random.uniform(kb, (1, fan_out), jnp.float32, -bound, bound)
        return w, b

    w1, b1 = linear(ks[0], ks[1], DECL_INPUT_SIZE, DECL_L1_NODE)
    w2, b2 = linear(ks[2], ks[3], DECL_L1_NODE, DECL_L2_NODE)
    w3, b3 = linear(ks[4], ks[5], DECL_L2_NODE, DECL_L3_NODE)
    w4, b4 = linear(ks[6], ks[7], DECL_L3_NODE, DECL_OUT)
    return dict(w1=w1, b1=b1, w2=w2, b2=b2, w3=w3, b3=b3, w4=w4, b4=b4)


def reference_forward(x, p):
    h = _leaky_relu(x @ p["w1"] + p["b1"])
    h = _leaky_relu(h @ p["w2"] + p["b2"])
    h = _leaky_relu(h @ p["w3"] + p["b3"])
    return h @ p["w4"] + p["b4"]


if __name__ == "__main__":
    key = jax.random.PRNGKey(0)
    k_x, k_p = jax.random.split(key)
    x = jax.random.normal(k_x, (BATCH, DECL_INPUT_SIZE), jnp.float32)
    params = init_params(k_p)

    out = brumaire_decl_forward(x, params)
    out = jax.block_until_ready(out)

    ref = reference_forward(x, params)
    assert out.shape == (BATCH, DECL_OUT)
    assert jnp.allclose(out, ref, atol=1e-5, rtol=1e-5)
    print("KERNEL_OK")
</pallas_src>

<mosaic_0001>
module attributes {stable_mosaic.version = 11 : i64} {
  func.func @decl_kernel(%arg0: i32, %arg1: memref<16x128xf32, #tpu.memory_space<vmem>>, %arg2: memref<4x128x128xf32, #tpu.memory_space<vmem>>, %arg3: memref<4x1x128xf32, #tpu.memory_space<vmem>>, %arg4: memref<16x128xf32, #tpu.memory_space<vmem>>) attributes {dimension_semantics = [#tpu.dimension_semantics<arbitrary>], iteration_bounds = array<i64: 1>, scalar_prefetch = 0 : i64, scratch_operands = 0 : i64, tpu.core_type = #tpu.core_type<tc>, window_params = [{pipeline_mode = #tpu.pipeline_mode<synchronous>, transform_indices = @transform_0, window_bounds = array<i64: 16, 128>}, {pipeline_mode = #tpu.pipeline_mode<synchronous>, transform_indices = @transform_1, window_bounds = array<i64: 4, 128, 128>}, {pipeline_mode = #tpu.pipeline_mode<synchronous>, transform_indices = @transform_2, window_bounds = array<i64: 4, 1, 128>}, {pipeline_mode = #tpu.pipeline_mode<synchronous>, transform_indices = @transform_3, window_bounds = array<i64: 16, 128>}]} {
    %c0 = arith.constant 0 : index
    %c0_0 = arith.constant 0 : index
    %0 = vector.load %arg1[%c0, %c0_0] : memref<16x128xf32, #tpu.memory_space<vmem>>, vector<16x128xf32>
    %c0_1 = arith.constant 0 : index
    %c0_2 = arith.constant 0 : index
    %c0_3 = arith.constant 0 : index
    %1 = vector.load %arg2[%c0_1, %c0_2, %c0_3] : memref<4x128x128xf32, #tpu.memory_space<vmem>>, vector<1x128x128xf32>
    %2 = vector.shape_cast %1 : vector<1x128x128xf32> to vector<128x128xf32>
    %cst = arith.constant dense<0.000000e+00> : vector<16x128xf32>
    %3 = tpu.matmul %0, %2, %cst {dimension_numbers = #tpu.dot_dimension_numbers<[1], [0], [0], [1], [0, 0, 1, 1], [], []>} : vector<16x128xf32>, vector<128x128xf32>, vector<16x128xf32> -> vector<16x128xf32>
    %c0_4 = arith.constant 0 : index
    %c0_5 = arith.constant 0 : index
    %c0_6 = arith.constant 0 : index
    %4 = vector.load %arg3[%c0_4, %c0_5, %c0_6] : memref<4x1x128xf32, #tpu.memory_space<vmem>>, vector<1x1x128xf32>
    %5 = vector.shape_cast %4 : vector<1x1x128xf32> to vector<1x128xf32>
    %6 = vector.broadcast %5 : vector<1x128xf32> to vector<16x128xf32>
    %7 = arith.addf %3, %6 : vector<16x128xf32>
    %cst_7 = arith.constant 0.000000e+00 : f32
    %8 = vector.broadcast %cst_7 : f32 to vector<16x128xf32>
    %9 = arith.cmpf ogt, %7, %8 : vector<16x128xf32>
    %cst_8 = arith.constant 0.00999999977 : f32
    %10 = vector.broadcast %cst_8 : f32 to vector<16x128xf32>
    %11 = arith.mulf %10, %7 : vector<16x128xf32>
    %12 = arith.select %9, %7, %11 : vector<16x128xi1>, vector<16x128xf32>
    %c1 = arith.constant 1 : index
    %c0_9 = arith.constant 0 : index
    %c0_10 = arith.constant 0 : index
    %13 = vector.load %arg2[%c1, %c0_9, %c0_10] : memref<4x128x128xf32, #tpu.memory_space<vmem>>, vector<1x128x128xf32>
    %14 = vector.shape_cast %13 : vector<1x128x128xf32> to vector<128x128xf32>
    %cst_11 = arith.constant dense<0.000000e+00> : vector<16x128xf32>
    %15 = tpu.matmul %12, %14, %cst_11 {dimension_numbers = #tpu.dot_dimension_numbers<[1], [0], [0], [1], [0, 0, 1, 1], [], []>} : vector<16x128xf32>, vector<128x128xf32>, vector<16x128xf32> -> vector<16x128xf32>
    %c1_12 = arith.constant 1 : index
    %c0_13 = arith.constant 0 : index
    %c0_14 = arith.constant 0 : index
    %16 = vector.load %arg3[%c1_12, %c0_13, %c0_14] : memref<4x1x128xf32, #tpu.memory_space<vmem>>, vector<1x1x128xf32>
    %17 = vector.shape_cast %16 : vector<1x1x128xf32> to vector<1x128xf32>
    %18 = vector.broadcast %17 : vector<1x128xf32> to vector<16x128xf32>
    %19 = arith.addf %15, %18 : vector<16x128xf32>
    %cst_15 = arith.constant 0.000000e+00 : f32
    %20 = vector.broadcast %cst_15 : f32 to vector<16x128xf32>
    %21 = arith.cmpf ogt, %19, %20 : vector<16x128xf32>
    %cst_16 = arith.constant 0.00999999977 : f32
    %22 = vector.broadcast %cst_16 : f32 to vector<16x128xf32>
    %23 = arith.mulf %22, %19 : vector<16x128xf32>
    %24 = arith.select %21, %19, %23 : vector<16x128xi1>, vector<16x128xf32>
    %c2 = arith.constant 2 : index
    %c0_17 = arith.constant 0 : index
    %c0_18 = arith.constant 0 : index
    %25 = vector.load %arg2[%c2, %c0_17, %c0_18] : memref<4x128x128xf32, #tpu.memory_space<vmem>>, vector<1x128x128xf32>
    %26 = vector.shape_cast %25 : vector<1x128x128xf32> to vector<128x128xf32>
    %cst_19 = arith.constant dense<0.000000e+00> : vector<16x128xf32>
    %27 = tpu.matmul %24, %26, %cst_19 {dimension_numbers = #tpu.dot_dimension_numbers<[1], [0], [0], [1], [0, 0, 1, 1], [], []>} : vector<16x128xf32>, vector<128x128xf32>, vector<16x128xf32> -> vector<16x128xf32>
    %c2_20 = arith.constant 2 : index
    %c0_21 = arith.constant 0 : index
    %c0_22 = arith.constant 0 : index
    %28 = vector.load %arg3[%c2_20, %c0_21, %c0_22] : memref<4x1x128xf32, #tpu.memory_space<vmem>>, vector<1x1x128xf32>
    %29 = vector.shape_cast %28 : vector<1x1x128xf32> to vector<1x128xf32>
    %30 = vector.broadcast %29 : vector<1x128xf32> to vector<16x128xf32>
    %31 = arith.addf %27, %30 : vector<16x128xf32>
    %cst_23 = arith.constant 0.000000e+00 : f32
    %32 = vector.broadcast %cst_23 : f32 to vector<16x128xf32>
    %33 = arith.cmpf ogt, %31, %32 : vector<16x128xf32>
    %cst_24 = arith.constant 0.00999999977 : f32
    %34 = vector.broadcast %cst_24 : f32 to vector<16x128xf32>
    %35 = arith.mulf %34, %31 : vector<16x128xf32>
    %36 = arith.select %33, %31, %35 : vector<16x128xi1>, vector<16x128xf32>
    %c3 = arith.constant 3 : index
    %c0_25 = arith.constant 0 : index
    %c0_26 = arith.constant 0 : index
    %37 = vector.load %arg2[%c3, %c0_25, %c0_26] : memref<4x128x128xf32, #tpu.memory_space<vmem>>, vector<1x128x128xf32>
    %38 = vector.shape_cast %37 : vector<1x128x128xf32> to vector<128x128xf32>
    %cst_27 = arith.constant dense<0.000000e+00> : vector<16x128xf32>
    %39 = tpu.matmul %36, %38, %cst_27 {dimension_numbers = #tpu.dot_dimension_numbers<[1], [0], [0], [1], [0, 0, 1, 1], [], []>} : vector<16x128xf32>, vector<128x128xf32>, vector<16x128xf32> -> vector<16x128xf32>
    %c3_28 = arith.constant 3 : index
    %c0_29 = arith.constant 0 : index
    %c0_30 = arith.constant 0 : index
    %40 = vector.load %arg3[%c3_28, %c0_29, %c0_30] : memref<4x1x128xf32, #tpu.memory_space<vmem>>, vector<1x1x128xf32>
    %41 = vector.shape_cast %40 : vector<1x1x128xf32> to vector<1x128xf32>
    %42 = vector.broadcast %41 : vector<1x128xf32> to vector<16x128xf32>
    %43 = arith.addf %39, %42 : vector<16x128xf32>
    %c0_31 = arith.constant 0 : index
    %c0_32 = arith.constant 0 : index
    %44 = vector.load %arg4[%c0_31, %c0_32] : memref<16x128xf32, #tpu.memory_space<vmem>>, vector<16x128xf32>
    tpu.vector_store %arg4[%c0_31, %c0_32], %43 {strides = array<i32>} : memref<16x128xf32, #tpu.memory_space<vmem>>, vector<16x128xf32>,
    return
  }
  func.func @transform_0(%arg0: i32) -> (i32, i32) {
    %c0_i32 = arith.constant 0 : i32
    %c0_i32_0 = arith.constant 0 : i32
    %c0_i32_1 = arith.constant 0 : i32
    return %c0_i32, %c0_i32_0 : i32, i32
  }
  func.func @transform_1(%arg0: i32) -> (i32, i32, i32) {
    %c0_i32 = arith.constant 0 : i32
    %c0_i32_0 = arith.constant 0 : i32
    %c0_i32_1 = arith.constant 0 : i32
    %c0_i32_2 = arith.constant 0 : i32
    return %c0_i32, %c0_i32_0, %c0_i32_1 : i32, i32, i32
  }
  func.func @transform_2(%arg0: i32) -> (i32, i32, i32) {
    %c0_i32 = arith.constant 0 : i32
    %c0_i32_0 = arith.constant 0 : i32
    %c0_i32_1 = arith.constant 0 : i32
    %c0_i32_2 = arith.constant 0 : i32
    return %c0_i32, %c0_i32_0, %c0_i32_1 : i32, i32, i32
  }
  func.func @transform_3(%arg0: i32) -> (i32, i32) {
    %c0_i32 = arith.constant 0 : i32
    %c0_i32_0 = arith.constant 0 : i32
    %c0_i32_1 = arith.constant 0 : i32
    return %c0_i32, %c0_i32_0 : i32, i32
  }
}

</mosaic_0001>

<llo_original>
// kernel: tpu_custom_call.1
$region0: #{tpu_custom_call.1}
  #allocation0 [shape = 'u32[]', space=smem, size = 0x4, offset = 0x4, fixed_abs, tag = 'smem constant byte address 0x4 - core index']
  #allocation1 [shape = 'u32[72,128]{1,0:T(1,128)}', space=vmem, size = 0x9000, scoped, tag = 'internal scratch']
  %s0 = inlined_call_operand.hbm [shape: f32[16,128], index: 0, kind: input, shape index: {}]
  %s1 = inlined_call_operand.hbm [shape: f32[4,128,128], index: 1, kind: input, shape index: {}]
  %s2 = inlined_call_operand.hbm [shape: f32[4,1,128], index: 2, kind: input, shape index: {}]
  %s3 = inlined_call_operand.hbm [shape: f32[16,128], index: 3, kind: output, shape index: {}]
  %s4 = sld [smem:[#allocation0]]
  $region34: #{tpu_custom_call.1} parent=0
    _
  %s6 = ssub.s32 1, %s4
  %s7 = scalar_select 0, %s6, %s4
  $region1: #{tpu_custom_call.1} parent=0
    #allocation2 [shape = 'u8[8192]{0}', space=vmem, size = 0x2000, scoped, tag = 'input window, operand 0, single buffered']
    #allocation3 [shape = 's32[1]{0}', space=sflag, size = 0x4, scoped, tag = 'scoped memory for tpu_custom_call.1']
    #allocation4 [shape = 's32[1]{0}', space=sflag, size = 0x4, scoped, tag = 'scoped memory for tpu_custom_call.1']
    #allocation5 [shape = 'u8[262144]{0}', space=vmem, size = 0x40000, scoped, tag = 'input window, operand 1, single buffered']
    #allocation6 [shape = 's32[1]{0}', space=sflag, size = 0x4, scoped, tag = 'scoped memory for tpu_custom_call.1']
    #allocation7 [shape = 'u8[2048]{0}', space=vmem, size = 0x800, scoped, tag = 'input window, operand 2, single buffered']
    #allocation8 [shape = 'u8[8192]{0}', space=vmem, size = 0x2000, scoped, tag = 'output window, operand 0, single buffered']
    %8 = vsyncpa [#allocation3], 0
    %9 = vsyncpa [#allocation6], 0
    %10 = vsyncpa [#allocation4], 0
    // Predicated region
    $region2: #{tpu_custom_call.1} parent=1 // pred_check
      _
    $region3: #{tpu_custom_call.1} parent=1 // pred_check_branch
      %12 = sbr.rel (0) target = $region5
    $region4: #{tpu_custom_call.1} parent=1 // pred_region
      %14 = vsyncadd [#allocation3], 0
      %s15 = sshll.u32 %s0, 4
      %s16 = int_to_ptr.hbm [resolvable:$true] %s15
      %s17 = sshll.u32 [#allocation2], 4
      %s18 = int_to_ptr.vmem [resolvable:$true] %s17
      %23 = dma.hbm_to_vmem [thread:$0]  %s16, 256, %s18, [#allocation3], 128, 128, 8
    $region5: #{tpu_custom_call.1} parent=1 // pred_fallthru
      _
    // Predicated region
    $region6: #{tpu_custom_call.1} parent=1 // pred_check
      _
    $region7: #{tpu_custom_call.1} parent=1 // pred_check_branch
      %25 = sbr.rel (0) target = $region9
    $region8: #{tpu_custom_call.1} parent=1 // pred_region
      %27 = vsyncadd [#allocation6], 0
      %s28 = sshll.u32 %s1, 4
      %s29 = int_to_ptr.hbm [resolvable:$true] %s28
      %s30 = sshll.u32 [#allocation5], 4
      %s31 = int_to_ptr.vmem [resolvable:$true] %s30
      %36 = dma.hbm_to_vmem [thread:$0]  %s29, 8192, %s31, [#allocation6], 128, 128, 8
    $region9: #{tpu_custom_call.1} parent=1 // pred_fallthru
      _
    // Predicated region
    $region10: #{tpu_custom_call.1} parent=1 // pred_check
      _
    $region11: #{tpu_custom_call.1} parent=1 // pred_check_branch
      %38 = sbr.rel (0) target = $region13
    $region12: #{tpu_custom_call.1} parent=1 // pred_region
      %40 = vsyncadd [#allocation6], 0
      %s41 = sshll.u32 %s2, 4
      %s42 = int_to_ptr.hbm [resolvable:$true] %s41
      %s43 = sshll.u32 [#allocation7], 4
      %s44 = int_to_ptr.vmem [resolvable:$true] %s43
      %49 = dma.hbm_to_vmem [thread:$0]  %s42, 64, %s44, [#allocation6], 16, 16, 1
    $region13: #{tpu_custom_call.1} parent=1 // pred_fallthru
      _
    // Predicated region
    $region14: #{tpu_custom_call.1} parent=1 // pred_check
      _
    $region15: #{tpu_custom_call.1} parent=1 // pred_check_branch
      %51 = sbr.rel (0) target = $region17
    $region16: #{tpu_custom_call.1} parent=1 // pred_region
      %53 = dma.done [#allocation3], 256
    $region17: #{tpu_custom_call.1} parent=1 // pred_fallthru
      _
    // Predicated region
    $region18: #{tpu_custom_call.1} parent=1 // pred_check
      _
    $region19: #{tpu_custom_call.1} parent=1 // pred_check_branch
      %55 = sbr.rel (0) target = $region21
    $region20: #{tpu_custom_call.1} parent=1 // pred_region
      %57 = dma.done [#allocation6], 8192
    $region21: #{tpu_custom_call.1} parent=1 // pred_fallthru
      _
    // Predicated region
    $region22: #{tpu_custom_call.1} parent=1 // pred_check
      _
    $region23: #{tpu_custom_call.1} parent=1 // pred_check_branch
      %59 = sbr.rel (0) target = $region25
    $region24: #{tpu_custom_call.1} parent=1 // pred_region
      %61 = dma.done [#allocation6], 64
    $region25: #{tpu_custom_call.1} parent=1 // pred_fallthru
      _
    %v62 = vld [vmem:[#allocation2] sm:$0xff]
    %v63 = vld [vmem:[#allocation2 + $0x8] sm:$0xff]
    %v64 = vld [vmem:[#allocation5] sm:$0xff]
    %v65 = vld [vmem:[#allocation5 + $0x8] sm:$0xff]
    %v66 = vld [vmem:[#allocation5 + $0x10] sm:$0xff]
    %v67 = vld [vmem:[#allocation5 + $0x18] sm:$0xff]
    %v68 = vld [vmem:[#allocation5 + $0x20] sm:$0xff]
    %v69 = vld [vmem:[#allocation5 + $0x28] sm:$0xff]
    %v70 = vld [vmem:[#allocation5 + $0x30] sm:$0xff]
    %v71 = vld [vmem:[#allocation5 + $0x38] sm:$0xff]
    %v72 = vld [vmem:[#allocation5 + $0x40] sm:$0xff]
    %v73 = vld [vmem:[#allocation5 + $0x48] sm:$0xff]
    %v74 = vld [vmem:[#allocation5 + $0x50] sm:$0xff]
    %v75 = vld [vmem:[#allocation5 + $0x58] sm:$0xff]
    %v76 = vld [vmem:[#allocation5 + $0x60] sm:$0xff]
    %v77 = vld [vmem:[#allocation5 + $0x68] sm:$0xff]
    %v78 = vld [vmem:[#allocation5 + $0x70] sm:$0xff]
    %v79 = vld [vmem:[#allocation5 + $0x78] sm:$0xff]
    %v80 = vld [vmem:[#allocation7] sm:$0x1]
    %v82 = vperm.slane %v80, 0
    %84 = vmatpush.msra.mxu0 %v79
    %85 = vmatpush.msra.mxu0 %v78
    %86 = vmatpush.msra.mxu0 %v77
    %87 = vmatpush.msra.mxu0 %v76
    %88 = vmatpush.msra.mxu0 %v75
    %89 = vmatpush.msra.mxu0 %v74
    %90 = vmatpush.msra.mxu0 %v73
    %91 = vmatpush.msra.mxu0 %v72
    %92 = vmatpush.msra.mxu0 %v71
    %93 = vmatpush.msra.mxu0 %v70
    %94 = vmatpush.msra.mxu0 %v69
    %95 = vmatpush.msra.mxu0 %v68
    %96 = vmatpush.msra.mxu0 %v67
    %97 = vmatpush.msra.mxu0 %v66
    %98 = vmatpush.msra.mxu0 %v65
    %99 = vmatpush.msra.mxu0 %v64
    %100 = vmatmul.f32.gmra.mxu0 %v62
    %v101 = vpop.f32.mrf.mxu0
    %v102 = vadd.f32 %v82, %v101
    %103 = vmatmul.f32.gmra.mxu0 %v63
    %v104 = vpop.f32.mrf.mxu0
    %v105 = vadd.f32 %v82, %v104
    %106 = vdwg.mxu0
    %vm107 = vcmp.gt.f32.partialorder %v102, 0.0
    %vm108 = vcmp.gt.f32.partialorder %v105, 0.0
    %v109 = vmul.f32 %v102, 0.01
    %v110 = vmul.f32 %v105, 0.01
    %v111 = vsel %vm107, %v102, %v109
    %v112 = vsel %vm108, %v105, %v110
    %s113 = scalar_lea.vmem [#allocation5], 128
    %v114 = vld [vmem:[%s113] sm:$0xff]
    %v115 = vld [vmem:[%s113 + $0x8] sm:$0xff]
    %v116 = vld [vmem:[%s113 + $0x10] sm:$0xff]
    %v117 = vld [vmem:[%s113 + $0x18] sm:$0xff]
    %v118 = vld [vmem:[%s113 + $0x20] sm:$0xff]
    %v119 = vld [vmem:[%s113 + $0x28] sm:$0xff]
    %v120 = vld [vmem:[%s113 + $0x30] sm:$0xff]
    %v121 = vld [vmem:[%s113 + $0x38] sm:$0xff]
    %v122 = vld [vmem:[%s113 + $0x40] sm:$0xff]
    %v123 = vld [vmem:[%s113 + $0x48] sm:$0xff]
    %v124 = vld [vmem:[%s113 + $0x50] sm:$0xff]
    %v125 = vld [vmem:[%s113 + $0x58] sm:$0xff]
    %v126 = vld [vmem:[%s113 + $0x60] sm:$0xff]
    %v127 = vld [vmem:[%s113 + $0x68] sm:$0xff]
    %v128 = vld [vmem:[%s113 + $0x70] sm:$0xff]
    %v129 = vld [vmem:[%s113 + $0x78] sm:$0xff]
    %s130 = scalar_lea.vmem [#allocation7], 1
    %v131 = vld [vmem:[%s130] sm:$0x1]
    %v133 = vperm.slane %v131, 0
    %135 = vmatpush.msra.mxu0 %v129
    %136 = vmatpush.msra.mxu0 %v128
    %137 = vmatpush.msra.mxu0 %v127
    %138 = vmatpush.msra.mxu0 %v126
    %139 = vmatpush.msra.mxu0 %v125
    %140 = vmatpush.msra.mxu0 %v124
    %141 = vmatpush.msra.mxu0 %v123
    %142 = vmatpush.msra.mxu0 %v122
    %143 = vmatpush.msra.mxu0 %v121
    %144 = vmatpush.msra.mxu0 %v120
    %145 = vmatpush.msra.mxu0 %v119
    %146 = vmatpush.msra.mxu0 %v118
    %147 = vmatpush.msra.mxu0 %v117
    %148 = vmatpush.msra.mxu0 %v116
    %149 = vmatpush.msra.mxu0 %v115
    %150 = vmatpush.msra.mxu0 %v114
    %151 = vmatmul.f32.gmra.mxu0 %v111
    %v152 = vpop.f32.mrf.mxu0
    %v153 = vadd.f32 %v133, %v152
    %154 = vmatmul.f32.gmra.mxu0 %v112
    %v155 = vpop.f32.mrf.mxu0
    %v156 = vadd.f32 %v133, %v155
    %157 = vdwg.mxu0
    %vm158 = vcmp.gt.f32.partialorder %v153, 0.0
    %vm159 = vcmp.gt.f32.partialorder %v156, 0.0
    %v160 = vmul.f32 %v153, 0.01
    %v161 = vmul.f32 %v156, 0.01
    %v162 = vsel %vm158, %v153, %v160
    %v163 = vsel %vm159, %v156, %v161
    %s164 = scalar_lea.vmem [#allocation5], 256
    %v165 = vld [vmem:[%s164] sm:$0xff]
    %v166 = vld [vmem:[%s164 + $0x8] sm:$0xff]
    %v167 = vld [vmem:[%s164 + $0x10] sm:$0xff]
    %v168 = vld [vmem:[%s164 + $0x18] sm:$0xff]
    %v169 = vld [vmem:[%s164 + $0x20] sm:$0xff]
    %v170 = vld [vmem:[%s164 + $0x28] sm:$0xff]
    %v171 = vld [vmem:[%s164 + $0x30] sm:$0xff]
    %v172 = vld [vmem:[%s164 + $0x38] sm:$0xff]
    %v173 = vld [vmem:[%s164 + $0x40] sm:$0xff]
    %v174 = vld [vmem:[%s164 + $0x48] sm:$0xff]
    %v175 = vld [vmem:[%s164 + $0x50] sm:$0xff]
    %v176 = vld [vmem:[%s164 + $0x58] sm:$0xff]
    %v177 = vld [vmem:[%s164 + $0x60] sm:$0xff]
    %v178 = vld [vmem:[%s164 + $0x68] sm:$0xff]
    %v179 = vld [vmem:[%s164 + $0x70] sm:$0xff]
    %v180 = vld [vmem:[%s164 + $0x78] sm:$0xff]
    %s181 = scalar_lea.vmem [#allocation7], 2
    %v182 = vld [vmem:[%s181] sm:$0x1]
    %v184 = vperm.slane %v182, 0
    %186 = vmatpush.msra.mxu0 %v180
    %187 = vmatpush.msra.mxu0 %v179
    %188 = vmatpush.msra.mxu0 %v178
    %189 = vmatpush.msra.mxu0 %v177
    %190 = vmatpush.msra.mxu0 %v176
    %191 = vmatpush.msra.mxu0 %v175
    %192 = vmatpush.msra.mxu0 %v174
    %193 = vmatpush.msra.mxu0 %v173
    %194 = vmatpush.msra.mxu0 %v172
    %195 = vmatpush.msra.mxu0 %v171
    %196 = vmatpush.msra.mxu0 %v170
    %197 = vmatpush.msra.mxu0 %v169
    %198 = vmatpush.msra.mxu0 %v168
    %199 = vmatpush.msra.mxu0 %v167
    %200 = vmatpush.msra.mxu0 %v166
    %201 = vmatpush.msra.mxu0 %v165
    %202 = vmatmul.f32.gmra.mxu0 %v162
    %v203 = vpop.f32.mrf.mxu0
    %v204 = vadd.f32 %v184, %v203
    %205 = vmatmul.f32.gmra.mxu0 %v163
    %v206 = vpop.f32.mrf.mxu0
    %v207 = vadd.f32 %v184, %v206
    %208 = vdwg.mxu0
    %vm209 = vcmp.gt.f32.partialorder %v204, 0.0
    %vm210 = vcmp.gt.f32.partialorder %v207, 0.0
    %v211 = vmul.f32 %v204, 0.01
    %v212 = vmul.f32 %v207, 0.01
    %v213 = vsel %vm209, %v204, %v211
    %v214 = vsel %vm210, %v207, %v212
    %s215 = scalar_lea.vmem [#allocation5], 384
    %v216 = vld [vmem:[%s215] sm:$0xff]
    %v217 = vld [vmem:[%s215 + $0x8] sm:$0xff]
    %v218 = vld [vmem:[%s215 + $0x10] sm:$0xff]
    %v219 = vld [vmem:[%s215 + $0x18] sm:$0xff]
    %v220 = vld [vmem:[%s215 + $0x20] sm:$0xff]
    %v221 = vld [vmem:[%s215 + $0x28] sm:$0xff]
    %v222 = vld [vmem:[%s215 + $0x30] sm:$0xff]
    %v223 = vld [vmem:[%s215 + $0x38] sm:$0xff]
    %v224 = vld [vmem:[%s215 + $0x40] sm:$0xff]
    %v225 = vld [vmem:[%s215 + $0x48] sm:$0xff]
    %v226 = vld [vmem:[%s215 + $0x50] sm:$0xff]
    %v227 = vld [vmem:[%s215 + $0x58] sm:$0xff]
    %v228 = vld [vmem:[%s215 + $0x60] sm:$0xff]
    %v229 = vld [vmem:[%s215 + $0x68] sm:$0xff]
    %v230 = vld [vmem:[%s215 + $0x70] sm:$0xff]
    %v231 = vld [vmem:[%s215 + $0x78] sm:$0xff]
    %s232 = scalar_lea.vmem [#allocation7], 3
    %v233 = vld [vmem:[%s232] sm:$0x1]
    %v235 = vperm.slane %v233, 0
    %237 = vmatpush.msra.mxu0 %v231
    %238 = vmatpush.msra.mxu0 %v230
    %239 = vmatpush.msra.mxu0 %v229
    %240 = vmatpush.msra.mxu0 %v228
    %241 = vmatpush.msra.mxu0 %v227
    %242 = vmatpush.msra.mxu0 %v226
    %243 = vmatpush.msra.mxu0 %v225
    %244 = vmatpush.msra.mxu0 %v224
    %245 = vmatpush.msra.mxu0 %v223
    %246 = vmatpush.msra.mxu0 %v222
    %247 = vmatpush.msra.mxu0 %v221
    %248 = vmatpush.msra.mxu0 %v220
    %249 = vmatpush.msra.mxu0 %v219
    %250 = vmatpush.msra.mxu0 %v218
    %251 = vmatpush.msra.mxu0 %v217
    %252 = vmatpush.msra.mxu0 %v216
    %253 = vmatmul.f32.gmra.mxu0 %v213
    %v254 = vpop.f32.mrf.mxu0
    %v255 = vadd.f32 %v235, %v254
    %256 = vmatmul.f32.gmra.mxu0 %v214
    %v257 = vpop.f32.mrf.mxu0
    %v258 = vadd.f32 %v235, %v257
    %259 = vdwg.mxu0
    %260 = vst [vmem:[#allocation8] sm:$0xff] %v255
    %261 = vst [vmem:[#allocation8 + $0x8] sm:$0xff] %v258
    // Predicated region
    $region26: #{tpu_custom_call.1} parent=1 // pred_check
      _
    $region27: #{tpu_custom_call.1} parent=1 // pred_check_branch
      %263 = sbr.rel (0) target = $region29
    $region28: #{tpu_custom_call.1} parent=1 // pred_region
      %265 = vsyncadd [#allocation4], 0
      %s266 = sshll.u32 [#allocation8], 4
      %s267 = int_to_ptr.vmem [resolvable:$true] %s266
      %s268 = sshll.u32 %s3, 4
      %s269 = int_to_ptr.hbm [resolvable:$true] %s268
      %274 = dma.vmem_to_hbm [thread:$0]  %s267, 256, %s269, [#allocation4], 128, 128, 8
    $region29: #{tpu_custom_call.1} parent=1 // pred_fallthru
      _
    // Predicated region
    $region30: #{tpu_custom_call.1} parent=1 // pred_check
      _
    $region31: #{tpu_custom_call.1} parent=1 // pred_check_branch
      %276 = sbr.rel (0) target = $region33
    $region32: #{tpu_custom_call.1} parent=1 // pred_region
      %278 = dma.done [#allocation4], 256
    $region33: #{tpu_custom_call.1} parent=1 // pred_fallthru
      _
    %279 = vsyncpa [#allocation3], 1
    %280 = vsyncpa [#allocation6], 1
    %281 = vsyncpa [#allocation4], 1

</llo_original>
